<compile_context>
chip_gen: v7x
topology: tpu7x:2x2x1
jax: 0.10.0
libtpu: 0.0.40
codegen_flags: <defaults>
</compile_context>

<pallas_src>
import functools

import jax
import jax.numpy as jnp
from jax.experimental import pallas as pl
from jax.experimental.pallas import tpu as pltpu

HIDDEN = 768   # BERT hidden size, fixed by the PyTorch module
LANES = 128    # TPU vreg lane width


def _round_up(x, m):
    return ((x + m - 1) // m) * m


def _fused_heads_kernel(h_ref, w_ref, b_ref, out_ref):
    """One MXU matmul for both heads.

    h_ref:   (tb, 768)   hidden-state tile (f32 or bf16 matmul operand)
    w_ref:   (768, Np)   [w1 | w2 | zero-pad], Np a multiple of 128
    b_ref:   (1, Np)     [b1 | b2 | zero-pad], always f32
    out_ref: (tb, Np)    lane 0 = sigmoid(reg head), lanes 1..C = logits
    """
    z = jnp.dot(h_ref[...], w_ref[...], preferred_element_type=jnp.float32)
    z = z + b_ref[...]                      # f32 epilogue (v5e-safe)
    # sigmoid == 1/(1+exp(-z)); exp lands on the EUP slot, the single VALU
    # divide per vreg is negligible for this DMA/MXU-bound kernel (approx
    # reciprocal avoided to hold the 1e-5 reference tolerance).
    sig = 1.0 / (1.0 + jnp.exp(-z))
    lane = jax.lax.broadcasted_iota(jnp.int32, z.shape, dimension=1)
    # One lane-dense unmasked store (no sub-128-lane vst.msk partial stores).
    out_ref[...] = jnp.where(lane == 0, sig, z)


@functools.partial(jax.jit, static_argnames=("block_b", "compute_dtype"))
def reg_class_mix_forward(hidden_state, w1, b1, w2, b2, *, block_b=256,
                          compute_dtype=jnp.float32):
    """hidden_state: [B, 768]. Returns {'score': [B,1], 'logits': [B,C]}.

    w1: [768, 1], b1: [1, 1], w2: [768, C], b2: [1, C]
    (weights stored transposed vs. torch's [out, in]).
    """
    B, H = hidden_state.shape
    assert H == HIDDEN
    C = w2.shape[1]
    N = 1 + C
    Np = _round_up(N, LANES)

    # Fuse + lane-pad both heads into a single weight / bias (plain XLA ops,
    # done once per call). Removes two N<<128 matmuls, three tiny VMEM
    # operands and their padded DMA streams.
    w = jnp.concatenate([w1, w2], axis=1)
    w = jnp.pad(w, ((0, 0), (0, Np - N)))
    b = jnp.concatenate([b1, b2], axis=1).astype(jnp.float32)
    b = jnp.pad(b, ((0, 0), (0, Np - N)))

    # Optional bf16 matmul operands (halves HBM bytes of the dominant
    # hidden_state stream); accumulation + bias/sigmoid epilogue stay f32.
    h = hidden_state.astype(compute_dtype)
    w = w.astype(compute_dtype)

    # Large batch tile (amortizes ~0.35us per-step overhead) but clamped so
    # tiny batches are not over-padded; pad B so the grid covers it exactly.
    block_b = max(8, min(block_b, _round_up(B, 8)))
    Bp = _round_up(B, block_b)
    if Bp != B:
        h = jnp.pad(h, ((0, Bp - B), (0, 0)))

    grid = (Bp // block_b,)

    out = pl.pallas_call(
        _fused_heads_kernel,
        out_shape=jax.ShapeDtypeStruct((Bp, Np), jnp.float32),
        grid_spec=pltpu.PrefetchScalarGridSpec(
            num_scalar_prefetch=0,
            grid=grid,
            in_specs=[
                pl.BlockSpec((block_b, H), lambda i: (i, 0)),   # hidden tile
                pl.BlockSpec((H, Np), lambda i: (0, 0)),        # fused weight
                pl.BlockSpec((1, Np), lambda i: (0, 0)),        # fused bias
            ],
            out_specs=pl.BlockSpec((block_b, Np), lambda i: (i, 0)),
        ),
        compiler_params=pltpu.CompilerParams(
            dimension_semantics=("parallel",),   # shards across v7x's 2 TCs
            # Explicit cap keeps large block_b choices within v7x's 64 MiB VMEM.
            vmem_limit_bytes=32 * 1024 * 1024,
        ),
    )(h, w, b)

    return {"score": out[:B, 0:1], "logits": out[:B, 1:1 + C]}


def init_params(key, num_classes):
    """Mirrors nn.init.normal_(std=0.02) weights, normal(0, 1) biases.

    Weights stored transposed ([in, out]) relative to torch's [out, in].
    """
    k1, k2, k3, k4 = jax.random.split(key, 4)
    w1 = 0.02 * jax.random.normal(k1, (HIDDEN, 1), dtype=jnp.float32)
    b1 = jax.random.normal(k2, (1, 1), dtype=jnp.float32)
    w2 = 0.02 * jax.random.normal(k3, (HIDDEN, num_classes), dtype=jnp.float32)
    b2 = jax.random.normal(k4, (1, num_classes), dtype=jnp.float32)
    return w1, b1, w2, b2


if __name__ == "__main__":
    key = jax.random.PRNGKey(0)
    k_h, k_p = jax.random.split(key)

    num_classes = 4
    w1, b1, w2, b2 = init_params(k_p, num_classes)

    # --- Test 1: multi-step grid (grid=2), exact multiple of block_b. ---
    batch = 16
    hidden_state = jax.random.normal(k_h, (batch, HIDDEN), dtype=jnp.float32)
    out = jax.block_until_ready(
        reg_class_mix_forward(hidden_state, w1, b1, w2, b2, block_b=8))

    ref_score = jax.nn.sigmoid(hidden_state @ w1 + b1)
    ref_logits = hidden_state @ w2 + b2
    assert out["score"].shape == (batch, 1)
    assert out["logits"].shape == (batch, num_classes)
    assert jnp.allclose(out["score"], ref_score, atol=1e-5)
    assert jnp.allclose(out["logits"], ref_logits, atol=1e-5)

    # --- Test 2: padding path (B not a multiple of 8), default big tile. ---
    batch2 = 10
    h2 = jax.random.normal(jax.random.PRNGKey(1), (batch2, HIDDEN),
                           dtype=jnp.float32)
    out2 = jax.block_until_ready(reg_class_mix_forward(h2, w1, b1, w2, b2))
    assert out2["score"].shape == (batch2, 1)
    assert out2["logits"].shape == (batch2, num_classes)
    assert jnp.allclose(out2["score"], jax.nn.sigmoid(h2 @ w1 + b1), atol=1e-5)
    assert jnp.allclose(out2["logits"], h2 @ w2 + b2, atol=1e-5)

    # --- Test 3: bf16 matmul operands (mem-BW optimization), f32 epilogue. ---
    out3 = jax.block_until_ready(
        reg_class_mix_forward(hidden_state, w1, b1, w2, b2, block_b=8,
                              compute_dtype=jnp.bfloat16))
    assert jnp.allclose(out3["score"], ref_score, atol=3e-2)
    assert jnp.allclose(out3["logits"], ref_logits, atol=3e-2)

    print("KERNEL_OK")
</pallas_src>

<mosaic_0001>
module attributes {stable_mosaic.version = 11 : i64} {
  func.func @_fused_heads_kernel(%arg0: i32, %arg1: memref<8x768xf32, #tpu.memory_space<vmem>>, %arg2: memref<768x128xf32, #tpu.memory_space<vmem>>, %arg3: memref<1x128xf32, #tpu.memory_space<vmem>>, %arg4: memref<8x128xf32, #tpu.memory_space<vmem>>) attributes {dimension_semantics = [#tpu.dimension_semantics<parallel>], iteration_bounds = array<i64: 2>, scalar_prefetch = 0 : i64, scratch_operands = 0 : i64, tpu.core_type = #tpu.core_type<tc>, window_params = [{transform_indices = @transform_0, window_bounds = array<i64: 8, 768>}, {pipeline_mode = #tpu.pipeline_mode<synchronous>, transform_indices = @transform_1, window_bounds = array<i64: 768, 128>}, {pipeline_mode = #tpu.pipeline_mode<synchronous>, transform_indices = @transform_2, window_bounds = array<i64: 1, 128>}, {transform_indices = @transform_3, window_bounds = array<i64: 8, 128>}]} {
    %c0 = arith.constant 0 : index
    %c0_0 = arith.constant 0 : index
    %0 = vector.load %arg1[%c0, %c0_0] : memref<8x768xf32, #tpu.memory_space<vmem>>, vector<8x768xf32>
    %c0_1 = arith.constant 0 : index
    %c0_2 = arith.constant 0 : index
    %1 = vector.load %arg2[%c0_1, %c0_2] : memref<768x128xf32, #tpu.memory_space<vmem>>, vector<768x128xf32>
    %cst = arith.constant dense<0.000000e+00> : vector<8x128xf32>
    %2 = tpu.matmul %0, %1, %cst {dimension_numbers = #tpu.dot_dimension_numbers<[1], [0], [0], [1], [0, 0, 1, 1], [], []>} : vector<8x768xf32>, vector<768x128xf32>, vector<8x128xf32> -> vector<8x128xf32>
    %c0_3 = arith.constant 0 : index
    %c0_4 = arith.constant 0 : index
    %3 = vector.load %arg3[%c0_3, %c0_4] : memref<1x128xf32, #tpu.memory_space<vmem>>, vector<1x128xf32>
    %4 = vector.broadcast %3 : vector<1x128xf32> to vector<8x128xf32>
    %5 = arith.addf %2, %4 : vector<8x128xf32>
    %cst_5 = arith.constant 0.000000e+00 : f32
    %6 = vector.broadcast %cst_5 : f32 to vector<8x128xf32>
    %7 = arith.subf %6, %5 : vector<8x128xf32>
    %8 = math.exp %7 : vector<8x128xf32>
    %cst_6 = arith.constant 1.000000e+00 : f32
    %9 = vector.broadcast %cst_6 : f32 to vector<8x128xf32>
    %10 = arith.addf %9, %8 : vector<8x128xf32>
    %cst_7 = arith.constant 1.000000e+00 : f32
    %11 = vector.broadcast %cst_7 : f32 to vector<8x128xf32>
    %12 = arith.divf %11, %10 : vector<8x128xf32>
    %13 = tpu.iota {dimensions = array<i32: 1>} : vector<8x128xi32>
    %c0_i32 = arith.constant 0 : i32
    %14 = vector.broadcast %c0_i32 : i32 to vector<8x128xi32>
    %15 = arith.cmpi eq, %13, %14 : vector<8x128xi32>
    %16 = arith.select %15, %12, %5 : vector<8x128xi1>, vector<8x128xf32>
    %c0_8 = arith.constant 0 : index
    %c0_9 = arith.constant 0 : index
    %17 = vector.load %arg4[%c0_8, %c0_9] : memref<8x128xf32, #tpu.memory_space<vmem>>, vector<8x128xf32>
    tpu.vector_store %arg4[%c0_8, %c0_9], %16 {strides = array<i32>} : memref<8x128xf32, #tpu.memory_space<vmem>>, vector<8x128xf32>,
    return
  }
  func.func @transform_0(%arg0: i32) -> (i32, i32) {
    %c0_i32 = arith.constant 0 : i32
    %c0_i32_0 = arith.constant 0 : i32
    return %arg0, %c0_i32 : i32, i32
  }
  func.func @transform_1(%arg0: i32) -> (i32, i32) {
    %c0_i32 = arith.constant 0 : i32
    %c0_i32_0 = arith.constant 0 : i32
    %c0_i32_1 = arith.constant 0 : i32
    return %c0_i32, %c0_i32_0 : i32, i32
  }
  func.func @transform_2(%arg0: i32) -> (i32, i32) {
    %c0_i32 = arith.constant 0 : i32
    %c0_i32_0 = arith.constant 0 : i32
    %c0_i32_1 = arith.constant 0 : i32
    return %c0_i32, %c0_i32_0 : i32, i32
  }
  func.func @transform_3(%arg0: i32) -> (i32, i32) {
    %c0_i32 = arith.constant 0 : i32
    %c0_i32_0 = arith.constant 0 : i32
    return %arg0, %c0_i32 : i32, i32
  }
}

</mosaic_0001>

<llo_original>
// kernel: reg_class_mix_forward.1
$region0: #{reg_class_mix_forward.1}
  #allocation0 [shape = 'u32[]', space=smem, size = 0x4, offset = 0x4, fixed_abs, tag = 'smem constant byte address 0x4 - core index']
  #allocation1 [shape = 'u32[144,128]{1,0:T(1,128)}', space=vmem, size = 0x12000, scoped, tag = 'internal scratch']
  %s0 = inlined_call_operand.vmem [shape: f32[16,768], index: 0, kind: input, shape index: {}]
  %s1 = inlined_call_operand.vmem [shape: f32[768,128], index: 1, kind: input, shape index: {}]
  %s2 = inlined_call_operand.vmem [shape: f32[1,128], index: 2, kind: input, shape index: {}]
  %s3 = inlined_call_operand.vmem [shape: f32[16,128], index: 3, kind: output, shape index: {}]
  %s4 = sld [smem:[#allocation0]]
  $region45: #{reg_class_mix_forward.1} parent=0
    _
  %s6 = ssub.s32 1, %s4
  %s7 = scalar_select 0, %s6, %s4
  loop: start=0, step=1, limit=4
  $region2: #{reg_class_mix_forward.1} parent=0 // loop_pre_header
    _
  $region3: #{reg_class_mix_forward.1} parent=0 // loop_header
    %s9 = sphi 0, %s13
    %p10 = scmp.ge.s32.totalorder %s9, 4
    %s19 = sphi 0, %s21
    %s22 = sphi 0, %s19
    %s23 = sphi 0, %s22
    %s39 = sphi 0, %s23
    %s43 = sphi 0, %s43
    %s45 = sphi 0, %s43
    %s46 = sphi 0, %s45
    %s60 = sphi 0, %s46
    %s64 = sphi 0, %s64
    %s66 = sphi 0, %s64
    %s67 = sphi 0, %s66
    %s81 = sphi 0, %s67
    %s87 = sphi 0, %s89
    %s90 = sphi 0, %s87
    %s91 = sphi 0, %s90
    %s107 = sphi 0, %s91
  $region4: #{reg_class_mix_forward.1} parent=0 // loop_header_branch
    %12 = sbr.rel (%p10) target = $region8
  $region5: #{reg_class_mix_forward.1} parent=0 // loop_body
    %s14 = ssub.s32 %s9, 1
    %s15 = ssub.s32 %s9, 2
    %s16 = sadd.s32 %s9, 1
    %s17 = ssub.s32 %s9, %s16
    %p18 = scmp.eq.s32.totalorder %s17, 0
    %s20 = sadd.s32 %s19, 1
    %s21 = scalar_select %p18, %s19, %s20
    %p24 = pneg %p18
    %p25 = scmp.eq.s32.totalorder %s9, 1
    %p26 = por %p24, %p25
    %p27 = scmp.ne.s32.totalorder %s19, %s22
    %p28 = scmp.eq.s32.totalorder %s9, 0
    %p29 = por %p27, %p28
    %p30 = scmp.ne.s32.totalorder %s19, %s22
    %p31 = scmp.eq.s32.totalorder %s14, 1
    %p32 = por %p30, %p31
    %p33 = scmp.ne.s32.totalorder %s22, %s23
    %p34 = scmp.eq.s32.totalorder %s14, 0
    %p35 = por %p33, %p34
    %p36 = scmp.ne.s32.totalorder %s22, %s23
    %p37 = scmp.eq.s32.totalorder %s15, 1
    %p38 = por %p36, %p37
    %p40 = scmp.ne.s32.totalorder %s23, %s39
    %p41 = scmp.eq.s32.totalorder %s15, 0
    %p42 = por %p40, %p41
    %s44 = sadd.s32 %s43, 1
    %p47 = scmp.eq.s32.totalorder %s9, 1
    %p48 = scmp.ne.s32.totalorder %s43, %s45
    %p49 = scmp.eq.s32.totalorder %s9, 0
    %p50 = por %p48, %p49
    %p51 = scmp.ne.s32.totalorder %s43, %s45
    %p52 = scmp.eq.s32.totalorder %s14, 1
    %p53 = por %p51, %p52
    %p54 = scmp.ne.s32.totalorder %s45, %s46
    %p55 = scmp.eq.s32.totalorder %s14, 0
    %p56 = por %p54, %p55
    %p57 = scmp.ne.s32.totalorder %s45, %s46
    %p58 = scmp.eq.s32.totalorder %s15, 1
    %p59 = por %p57, %p58
    %p61 = scmp.ne.s32.totalorder %s46, %s60
    %p62 = scmp.eq.s32.totalorder %s15, 0
    %p63 = por %p61, %p62
    %s65 = sadd.s32 %s64, 1
    %p68 = scmp.eq.s32.totalorder %s9, 1
    %p69 = scmp.ne.s32.totalorder %s64, %s66
    %p70 = scmp.eq.s32.totalorder %s9, 0
    %p71 = por %p69, %p70
    %p72 = scmp.ne.s32.totalorder %s64, %s66
    %p73 = scmp.eq.s32.totalorder %s14, 1
    %p74 = por %p72, %p73
    %p75 = scmp.ne.s32.totalorder %s66, %s67
    %p76 = scmp.eq.s32.totalorder %s14, 0
    %p77 = por %p75, %p76
    %p78 = scmp.ne.s32.totalorder %s66, %s67
    %p79 = scmp.eq.s32.totalorder %s15, 1
    %p80 = por %p78, %p79
    %p82 = scmp.ne.s32.totalorder %s67, %s81
    %p83 = scmp.eq.s32.totalorder %s15, 0
    %p84 = por %p82, %p83
    %s85 = ssub.s32 %s9, %s16
    %p86 = scmp.eq.s32.totalorder %s85, 0
    %s88 = sadd.s32 %s87, 1
    %s89 = scalar_select %p86, %s87, %s88
    %p92 = pneg %p86
    %p93 = scmp.eq.s32.totalorder %s9, 1
    %p94 = por %p92, %p93
    %p95 = scmp.ne.s32.totalorder %s87, %s90
    %p96 = scmp.eq.s32.totalorder %s9, 0
    %p97 = por %p95, %p96
    %p98 = scmp.ne.s32.totalorder %s87, %s90
    %p99 = scmp.eq.s32.totalorder %s14, 1
    %p100 = por %p98, %p99
    %p101 = scmp.ne.s32.totalorder %s90, %s91
    %p102 = scmp.eq.s32.totalorder %s14, 0
    %p103 = por %p101, %p102
    %p104 = scmp.ne.s32.totalorder %s90, %s91
    %p105 = scmp.eq.s32.totalorder %s15, 1
    %p106 = por %p104, %p105
    %p108 = scmp.ne.s32.totalorder %s91, %s107
    %p109 = scmp.eq.s32.totalorder %s15, 0
    %p110 = por %p108, %p109
    %p111 = scmp.le.s32.totalorder 1, %s9
    %p112 = scmp.lt.s32.totalorder %s9, 3
    %p113 = pnand %p111, %p112
    %p114 = pneg %p113
    // Predicated region
    $region9: #{reg_class_mix_forward.1} parent=5 // pred_check
      _
    $region10: #{reg_class_mix_forward.1} parent=5 // pred_check_branch
      %116 = sbr.rel (%p113) target = $region12
    $region11: #{reg_class_mix_forward.1} parent=5 // pred_region
      %s117 = ssub.s32 %s9, 1
      // Predicated region
      $region13: #{reg_class_mix_forward.1} parent=11 // pred_check
        %p118 = pneg %p56
      $region14: #{reg_class_mix_forward.1} parent=11 // pred_check_branch
        %120 = sbr.rel (%p118) target = $region16
      $region15: #{reg_class_mix_forward.1} parent=11 // pred_region
        _
      $region16: #{reg_class_mix_forward.1} parent=11 // pred_fallthru
        _
      // Predicated region
      $region17: #{reg_class_mix_forward.1} parent=11 // pred_check
        %p121 = pneg %p77
      $region18: #{reg_class_mix_forward.1} parent=11 // pred_check_branch
        %123 = sbr.rel (%p121) target = $region20
      $region19: #{reg_class_mix_forward.1} parent=11 // pred_region
        _
      $region20: #{reg_class_mix_forward.1} parent=11 // pred_fallthru
        _
    $region12: #{reg_class_mix_forward.1} parent=5 // pred_fallthru
      _
    %p124 = scmp.lt.s32.totalorder %s9, 2
    // Predicated region
    $region21: #{reg_class_mix_forward.1} parent=5 // pred_check
      %p125 = pneg %p124
    $region22: #{reg_class_mix_forward.1} parent=5 // pred_check_branch
      %127 = sbr.rel (%p125) target = $region24
    $region23: #{reg_class_mix_forward.1} parent=5 // pred_region
      // Predicated region
      $region25: #{reg_class_mix_forward.1} parent=23 // pred_check
        %p128 = pneg %p29
      $region26: #{reg_class_mix_forward.1} parent=23 // pred_check_branch
        %130 = sbr.rel (%p128) target = $region28
      $region27: #{reg_class_mix_forward.1} parent=23 // pred_region
        %p131 = scmp.lt.s32.totalorder %s9, 1
        %s132 = scalar_select %p131, %s9, 1
        %s133 = smul.addr %s132, 6
        %s134 = smul.addr %s133, 8
        %s135 = scalar_lea.vmem %s0, %s134
      $region28: #{reg_class_mix_forward.1} parent=23 // pred_fallthru
        _
    $region24: #{reg_class_mix_forward.1} parent=5 // pred_fallthru
      _
    %p136 = scmp.le.s32.totalorder 1, %s9
    %p137 = scmp.lt.s32.totalorder %s9, 3
    %p138 = pnand %p136, %p137
    %p139 = pneg %p138
    // Predicated region
    $region29: #{reg_class_mix_forward.1} parent=5 // pred_check
      _
    $region30: #{reg_class_mix_forward.1} parent=5 // pred_check_branch
      %141 = sbr.rel (%p138) target = $region32
    $region31: #{reg_class_mix_forward.1} parent=5 // pred_region
      %s142 = ssub.s32 %s9, 1
      %p143 = scmp.lt.s32.totalorder %s14, 1
      %s144 = scalar_select %p143, %s14, 1
      %s145 = smul.addr %s144, 6
      %s146 = smul.addr %s145, 8
      %s147 = scalar_lea.vmem %s0, %s146
      %p148 = pneg %p35
      %p149 = pneg %p32
      %p150 = pneg %p56
      %p151 = pneg %p53
      %p152 = pneg %p77
      %p153 = pneg %p74
      %p154 = pneg %p103
      %p155 = pneg %p100
      %p156 = scmp.lt.s32.totalorder %s14, 1
      %s157 = scalar_select %p156, %s14, 1
      %s158 = smul.addr %s157, 8
      %s159 = scalar_lea.vmem %s3, %s158
      %p160 = scmp.lt.s32.totalorder %s14, 1
      %s161 = scalar_select %p160, %s14, 1
      %s162 = smul.addr %s161, 6
      %s163 = smul.addr %s162, 8
      %s164 = scalar_lea.vmem %s0, %s163
      %p165 = scmp.lt.s32.totalorder %s14, 1
      %s166 = scalar_select %p165, %s14, 1
      %s167 = smul.addr %s166, 8
      %s168 = scalar_lea.vmem %s3, %s167
      %v169 = vld [vmem:[%s164] sm:$0xff]
      %v170 = vld [vmem:[%s164 + $0x8] sm:$0xff]
      %v171 = vld [vmem:[%s164 + $0x10] sm:$0xff]
      %v172 = vld [vmem:[%s164 + $0x18] sm:$0xff]
      %v173 = vld [vmem:[%s164 + $0x20] sm:$0xff]
      %v174 = vld [vmem:[%s164 + $0x28] sm:$0xff]
      %v175 = vld [vmem:[%s1] sm:$0xff]
      %v176 = vld [vmem:[%s1 + $0x8] sm:$0xff]
      %v177 = vld [vmem:[%s1 + $0x10] sm:$0xff]
      %v178 = vld [vmem:[%s1 + $0x18] sm:$0xff]
      %v179 = vld [vmem:[%s1 + $0x20] sm:$0xff]
      %v180 = vld [vmem:[%s1 + $0x28] sm:$0xff]
      %v181 = vld [vmem:[%s1 + $0x30] sm:$0xff]
      %v182 = vld [vmem:[%s1 + $0x38] sm:$0xff]
      %v183 = vld [vmem:[%s1 + $0x40] sm:$0xff]
      %v184 = vld [vmem:[%s1 + $0x48] sm:$0xff]
      %v185 = vld [vmem:[%s1 + $0x50] sm:$0xff]
      %v186 = vld [vmem:[%s1 + $0x58] sm:$0xff]
      %v187 = vld [vmem:[%s1 + $0x60] sm:$0xff]
      %v188 = vld [vmem:[%s1 + $0x68] sm:$0xff]
      %v189 = vld [vmem:[%s1 + $0x70] sm:$0xff]
      %v190 = vld [vmem:[%s1 + $0x78] sm:$0xff]
      %v191 = vld [vmem:[%s1 + $0x80] sm:$0xff]
      %v192 = vld [vmem:[%s1 + $0x88] sm:$0xff]
      %v193 = vld [vmem:[%s1 + $0x90] sm:$0xff]
      %v194 = vld [vmem:[%s1 + $0x98] sm:$0xff]
      %v195 = vld [vmem:[%s1 + $0xa0] sm:$0xff]
      %v196 = vld [vmem:[%s1 + $0xa8] sm:$0xff]
      %v197 = vld [vmem:[%s1 + $0xb0] sm:$0xff]
      %v198 = vld [vmem:[%s1 + $0xb8] sm:$0xff]
      %v199 = vld [vmem:[%s1 + $0xc0] sm:$0xff]
      %v200 = vld [vmem:[%s1 + $0xc8] sm:$0xff]
      %v201 = vld [vmem:[%s1 + $0xd0] sm:$0xff]
      %v202 = vld [vmem:[%s1 + $0xd8] sm:$0xff]
      %v203 = vld [vmem:[%s1 + $0xe0] sm:$0xff]
      %v204 = vld [vmem:[%s1 + $0xe8] sm:$0xff]
      %v205 = vld [vmem:[%s1 + $0xf0] sm:$0xff]
      %v206 = vld [vmem:[%s1 + $0xf8] sm:$0xff]
      %v207 = vld [vmem:[%s1 + $0x100] sm:$0xff]
      %v208 = vld [vmem:[%s1 + $0x108] sm:$0xff]
      %v209 = vld [vmem:[%s1 + $0x110] sm:$0xff]
      %v210 = vld [vmem:[%s1 + $0x118] sm:$0xff]
      %v211 = vld [vmem:[%s1 + $0x120] sm:$0xff]
      %v212 = vld [vmem:[%s1 + $0x128] sm:$0xff]
      %v213 = vld [vmem:[%s1 + $0x130] sm:$0xff]
      %v214 = vld [vmem:[%s1 + $0x138] sm:$0xff]
      %v215 = vld [vmem:[%s1 + $0x140] sm:$0xff]
      %v216 = vld [vmem:[%s1 + $0x148] sm:$0xff]
      %v217 = vld [vmem:[%s1 + $0x150] sm:$0xff]
      %v218 = vld [vmem:[%s1 + $0x158] sm:$0xff]
      %v219 = vld [vmem:[%s1 + $0x160] sm:$0xff]
      %v220 = vld [vmem:[%s1 + $0x168] sm:$0xff]
      %v221 = vld [vmem:[%s1 + $0x170] sm:$0xff]
      %v222 = vld [vmem:[%s1 + $0x178] sm:$0xff]
      %v223 = vld [vmem:[%s1 + $0x180] sm:$0xff]
      %v224 = vld [vmem:[%s1 + $0x188] sm:$0xff]
      %v225 = vld [vmem:[%s1 + $0x190] sm:$0xff]
      %v226 = vld [vmem:[%s1 + $0x198] sm:$0xff]
      %v227 = vld [vmem:[%s1 + $0x1a0] sm:$0xff]
      %v228 = vld [vmem:[%s1 + $0x1a8] sm:$0xff]
      %v229 = vld [vmem:[%s1 + $0x1b0] sm:$0xff]
      %v230 = vld [vmem:[%s1 + $0x1b8] sm:$0xff]
      %v231 = vld [vmem:[%s1 + $0x1c0] sm:$0xff]
      %v232 = vld [vmem:[%s1 + $0x1c8] sm:$0xff]
      %v233 = vld [vmem:[%s1 + $0x1d0] sm:$0xff]
      %v234 = vld [vmem:[%s1 + $0x1d8] sm:$0xff]
      %v235 = vld [vmem:[%s1 + $0x1e0] sm:$0xff]
      %v236 = vld [vmem:[%s1 + $0x1e8] sm:$0xff]
      %v237 = vld [vmem:[%s1 + $0x1f0] sm:$0xff]
      %v238 = vld [vmem:[%s1 + $0x1f8] sm:$0xff]
      %v239 = vld [vmem:[%s1 + $0x200] sm:$0xff]
      %v240 = vld [vmem:[%s1 + $0x208] sm:$0xff]
      %v241 = vld [vmem:[%s1 + $0x210] sm:$0xff]
      %v242 = vld [vmem:[%s1 + $0x218] sm:$0xff]
      %v243 = vld [vmem:[%s1 + $0x220] sm:$0xff]
      %v244 = vld [vmem:[%s1 + $0x228] sm:$0xff]
      %v245 = vld [vmem:[%s1 + $0x230] sm:$0xff]
      %v246 = vld [vmem:[%s1 + $0x238] sm:$0xff]
      %v247 = vld [vmem:[%s1 + $0x240] sm:$0xff]
      %v248 = vld [vmem:[%s1 + $0x248] sm:$0xff]
      %v249 = vld [vmem:[%s1 + $0x250] sm:$0xff]
      %v250 = vld [vmem:[%s1 + $0x258] sm:$0xff]
      %v251 = vld [vmem:[%s1 + $0x260] sm:$0xff]
      %v252 = vld [vmem:[%s1 + $0x268] sm:$0xff]
      %v253 = vld [vmem:[%s1 + $0x270] sm:$0xff]
      %v254 = vld [vmem:[%s1 + $0x278] sm:$0xff]
      %v255 = vld [vmem:[%s1 + $0x280] sm:$0xff]
      %v256 = vld [vmem:[%s1 + $0x288] sm:$0xff]
      %v257 = vld [vmem:[%s1 + $0x290] sm:$0xff]
      %v258 = vld [vmem:[%s1 + $0x298] sm:$0xff]
      %v259 = vld [vmem:[%s1 + $0x2a0] sm:$0xff]
      %v260 = vld [vmem:[%s1 + $0x2a8] sm:$0xff]
      %v261 = vld [vmem:[%s1 + $0x2b0] sm:$0xff]
      %v262 = vld [vmem:[%s1 + $0x2b8] sm:$0xff]
      %v263 = vld [vmem:[%s1 + $0x2c0] sm:$0xff]
      %v264 = vld [vmem:[%s1 + $0x2c8] sm:$0xff]
      %v265 = vld [vmem:[%s1 + $0x2d0] sm:$0xff]
      %v266 = vld [vmem:[%s1 + $0x2d8] sm:$0xff]
      %v267 = vld [vmem:[%s1 + $0x2e0] sm:$0xff]
      %v268 = vld [vmem:[%s1 + $0x2e8] sm:$0xff]
      %v269 = vld [vmem:[%s1 + $0x2f0] sm:$0xff]
      %v270 = vld [vmem:[%s1 + $0x2f8] sm:$0xff]
      %v271 = vld [vmem:[%s2] sm:$0x1]
      %v273 = vlaneseq
      %v274 = vshrl.u32 %v273, 7
      %v275 = vsub.s32 0, %v274
      %v276 = vrot.slane %v271, %v275
      %278 = vmatprep.subr.mxu0 0.0
      %279 = vmatpush1.msra.mxu0 %v175
      %280 = vmatprep.subr.mxu0 0.0
      %281 = vmatpush1.msra.mxu0 %v176
      %282 = vmatprep.subr.mxu0 0.0
      %283 = vmatpush1.msra.mxu0 %v177
      %284 = vmatprep.subr.mxu0 0.0
      %285 = vmatpush1.msra.mxu0 %v178
      %286 = vmatprep.subr.mxu0 0.0
      %287 = vmatpush1.msra.mxu0 %v179
      %288 = vmatprep.subr.mxu0 0.0
      %289 = vmatpush1.msra.mxu0 %v180
      %290 = vmatprep.subr.mxu0 0.0
      %291 = vmatpush1.msra.mxu0 %v181
      %292 = vmatprep.subr.mxu0 0.0
      %293 = vmatpush1.msra.mxu0 %v182
      %294 = vmatprep.subr.mxu0 0.0
      %295 = vmatpush1.msra.mxu0 %v183
      %296 = vmatprep.subr.mxu0 0.0
      %297 = vmatpush1.msra.mxu0 %v184
      %298 = vmatprep.subr.mxu0 0.0
      %299 = vmatpush1.msra.mxu0 %v185
      %300 = vmatprep.subr.mxu0 0.0
      %301 = vmatpush1.msra.mxu0 %v186
      %302 = vmatprep.subr.mxu0 0.0
      %303 = vmatpush1.msra.mxu0 %v187
      %304 = vmatprep.subr.mxu0 0.0
      %305 = vmatpush1.msra.mxu0 %v188
      %306 = vmatprep.subr.mxu0 0.0
      %307 = vmatpush1.msra.mxu0 %v189
      %308 = vmatprep.subr.mxu0 0.0
      %309 = vmatpush1.msra.mxu0 %v190
      %310 = vmatprep.subr.mxu0 0.0
      %311 = vmatpush1.msra.mxu0 %v191
      %312 = vmatprep.subr.mxu0 0.0
      %313 = vmatpush1.msra.mxu0 %v192
      %314 = vmatprep.subr.mxu0 0.0
      %315 = vmatpush1.msra.mxu0 %v193
      %316 = vmatprep.subr.mxu0 0.0
      %317 = vmatpush1.msra.mxu0 %v194
      %318 = vmatprep.subr.mxu0 0.0
      %319 = vmatpush1.msra.mxu0 %v195
      %320 = vmatprep.subr.mxu0 0.0
      %321 = vmatpush1.msra.mxu0 %v196
      %322 = vmatprep.subr.mxu0 0.0
      %323 = vmatpush1.msra.mxu0 %v197
      %324 = vmatprep.subr.mxu0 0.0
      %325 = vmatpush1.msra.mxu0 %v198
      %326 = vmatprep.subr.mxu0 0.0
      %327 = vmatpush1.msra.mxu0 %v199
      %328 = vmatprep.subr.mxu0 0.0
      %329 = vmatpush1.msra.mxu0 %v200
      %330 = vmatprep.subr.mxu0 0.0
      %331 = vmatpush1.msra.mxu0 %v201
      %332 = vmatprep.subr.mxu0 0.0
      %333 = vmatpush1.msra.mxu0 %v202
      %334 = vmatprep.subr.mxu0 0.0
      %335 = vmatpush1.msra.mxu0 %v203
      %336 = vmatprep.subr.mxu0 0.0
      %337 = vmatpush1.msra.mxu0 %v204
      %338 = vmatprep.subr.mxu0 0.0
      %339 = vmatpush1.msra.mxu0 %v205
      %340 = vmatprep.subr.mxu0 0.0
      %341 = vmatpush1.msra.mxu0 %v206
      %342 = vmatprep.mubr.f32.mxu0 %v170
      %343 = vmatmul.mubr.f32.gmra.mrb[0].mxu0 %v169
      %v344 = vpop.f32.mrb[0].mxu0
      %v345 = vadd.f32 %v276, %v344
      %v346 = vpop.f32.mrb[0].mxu0
      %347 = vdwg.mxu0
      %348 = vmatprep.subr.mxu0 0.0
      %349 = vmatpush1.msra.mxu0 %v207
      %350 = vmatprep.subr.mxu0 0.0
      %351 = vmatpush1.msra.mxu0 %v208
      %352 = vmatprep.subr.mxu0 0.0
      %353 = vmatpush1.msra.mxu0 %v209
      %354 = vmatprep.subr.mxu0 0.0
      %355 = vmatpush1.msra.mxu0 %v210
      %356 = vmatprep.subr.mxu0 0.0
      %357 = vmatpush1.msra.mxu0 %v211
      %358 = vmatprep.subr.mxu0 0.0
      %359 = vmatpush1.msra.mxu0 %v212
      %360 = vmatprep.subr.mxu0 0.0
      %361 = vmatpush1.msra.mxu0 %v213
      %362 = vmatprep.subr.mxu0 0.0
      %363 = vmatpush1.msra.mxu0 %v214
      %364 = vmatprep.subr.mxu0 0.0
      %365 = vmatpush1.msra.mxu0 %v215
      %366 = vmatprep.subr.mxu0 0.0
      %367 = vmatpush1.msra.mxu0 %v216
      %368 = vmatprep.subr.mxu0 0.0
      %369 = vmatpush1.msra.mxu0 %v217
      %370 = vmatprep.subr.mxu0 0.0
      %371 = vmatpush1.msra.mxu0 %v218
      %372 = vmatprep.subr.mxu0 0.0
      %373 = vmatpush1.msra.mxu0 %v219
      %374 = vmatprep.subr.mxu0 0.0
      %375 = vmatpush1.msra.mxu0 %v220
      %376 = vmatprep.subr.mxu0 0.0
      %377 = vmatpush1.msra.mxu0 %v221
      %378 = vmatprep.subr.mxu0 0.0
      %379 = vmatpush1.msra.mxu0 %v222
      %380 = vmatprep.subr.mxu0 0.0
      %381 = vmatpush1.msra.mxu0 %v223
      %382 = vmatprep.subr.mxu0 0.0
      %383 = vmatpush1.msra.mxu0 %v224
      %384 = vmatprep.subr.mxu0 0.0
      %385 = vmatpush1.msra.mxu0 %v225
      %386 = vmatprep.subr.mxu0 0.0
      %387 = vmatpush1.msra.mxu0 %v226
      %388 = vmatprep.subr.mxu0 0.0
      %389 = vmatpush1.msra.mxu0 %v227
      %390 = vmatprep.subr.mxu0 0.0
      %391 = vmatpush1.msra.mxu0 %v228
      %392 = vmatprep.subr.mxu0 0.0
      %393 = vmatpush1.msra.mxu0 %v229
      %394 = vmatprep.subr.mxu0 0.0
      %395 = vmatpush1.msra.mxu0 %v230
      %396 = vmatprep.subr.mxu0 0.0
      %397 = vmatpush1.msra.mxu0 %v231
      %398 = vmatprep.subr.mxu0 0.0
      %399 = vmatpush1.msra.mxu0 %v232
      %400 = vmatprep.subr.mxu0 0.0
      %401 = vmatpush1.msra.mxu0 %v233
      %402 = vmatprep.subr.mxu0 0.0
      %403 = vmatpush1.msra.mxu0 %v234
      %404 = vmatprep.subr.mxu0 0.0
      %405 = vmatpush1.msra.mxu0 %v235
      %406 = vmatprep.subr.mxu0 0.0
      %407 = vmatpush1.msra.mxu0 %v236
      %408 = vmatprep.subr.mxu0 0.0
      %409 = vmatpush1.msra.mxu0 %v237
      %410 = vmatprep.subr.mxu0 0.0
      %411 = vmatpush1.msra.mxu0 %v238
      %412 = vmatprep.mubr.f32.mxu0 %v172
      %413 = vmatmul.mubr.f32.gmra.mrb[0].mxu0 %v171
      %v414 = vpop.f32.mrb[0].mxu0
      %v415 = vadd.f32 %v345, %v414
      %v416 = vpop.f32.mrb[0].mxu0
      %417 = vdwg.mxu0
      %418 = vmatprep.subr.mxu0 0.0
      %419 = vmatpush1.msra.mxu0 %v239
      %420 = vmatprep.subr.mxu0 0.0
      %421 = vmatpush1.msra.mxu0 %v240
      %422 = vmatprep.subr.mxu0 0.0
      %423 = vmatpush1.msra.mxu0 %v241
      %424 = vmatprep.subr.mxu0 0.0
      %425 = vmatpush1.msra.mxu0 %v242
      %426 = vmatprep.subr.mxu0 0.0
      %427 = vmatpush1.msra.mxu0 %v243
      %428 = vmatprep.subr.mxu0 0.0
      %429 = vmatpush1.msra.mxu0 %v244
      %430 = vmatprep.subr.mxu0 0.0
      %431 = vmatpush1.msra.mxu0 %v245
      %432 = vmatprep.subr.mxu0 0.0
      %433 = vmatpush1.msra.mxu0 %v246
      %434 = vmatprep.subr.mxu0 0.0
      %435 = vmatpush1.msra.mxu0 %v247
      %436 = vmatprep.subr.mxu0 0.0
      %437 = vmatpush1.msra.mxu0 %v248
      %438 = vmatprep.subr.mxu0 0.0
      %439 = vmatpush1.msra.mxu0 %v249
      %440 = vmatprep.subr.mxu0 0.0
      %441 = vmatpush1.msra.mxu0 %v250
      %442 = vmatprep.subr.mxu0 0.0
      %443 = vmatpush1.msra.mxu0 %v251
      %444 = vmatprep.subr.mxu0 0.0
      %445 = vmatpush1.msra.mxu0 %v252
      %446 = vmatprep.subr.mxu0 0.0
      %447 = vmatpush1.msra.mxu0 %v253
      %448 = vmatprep.subr.mxu0 0.0
      %449 = vmatpush1.msra.mxu0 %v254
      %450 = vmatprep.subr.mxu0 0.0
      %451 = vmatpush1.msra.mxu0 %v255
      %452 = vmatprep.subr.mxu0 0.0
      %453 = vmatpush1.msra.mxu0 %v256
      %454 = vmatprep.subr.mxu0 0.0
      %455 = vmatpush1.msra.mxu0 %v257
      %456 = vmatprep.subr.mxu0 0.0
      %457 = vmatpush1.msra.mxu0 %v258
      %458 = vmatprep.subr.mxu0 0.0
      %459 = vmatpush1.msra.mxu0 %v259
      %460 = vmatprep.subr.mxu0 0.0
      %461 = vmatpush1.msra.mxu0 %v260
      %462 = vmatprep.subr.mxu0 0.0
      %463 = vmatpush1.msra.mxu0 %v261
      %464 = vmatprep.subr.mxu0 0.0
      %465 = vmatpush1.msra.mxu0 %v262
      %466 = vmatprep.subr.mxu0 0.0
      %467 = vmatpush1.msra.mxu0 %v263
      %468 = vmatprep.subr.mxu0 0.0
      %469 = vmatpush1.msra.mxu0 %v264
      %470 = vmatprep.subr.mxu0 0.0
      %471 = vmatpush1.msra.mxu0 %v265
      %472 = vmatprep.subr.mxu0 0.0
      %473 = vmatpush1.msra.mxu0 %v266
      %474 = vmatprep.subr.mxu0 0.0
      %475 = vmatpush1.msra.mxu0 %v267
      %476 = vmatprep.subr.mxu0 0.0
      %477 = vmatpush1.msra.mxu0 %v268
      %478 = vmatprep.subr.mxu0 0.0
      %479 = vmatpush1.msra.mxu0 %v269
      %480 = vmatprep.subr.mxu0 0.0
      %481 = vmatpush1.msra.mxu0 %v270
      %482 = vmatprep.mubr.f32.mxu0 %v174
      %483 = vmatmul.mubr.f32.gmra.mrb[0].mxu0 %v173
      %v484 = vpop.f32.mrb[0].mxu0
      %v485 = vadd.f32 %v415, %v484
      %v486 = vpop.f32.mrb[0].mxu0
      %487 = vdwg.mxu0
      %v488 = vsub.f32 0.0, %v485
      %v489 = vmul.f32 %v488, 1.442695
      %v490 = vpow.pop %v489
      %v491 = vadd.f32 %v490, 1.0
      %v492 = vrcp.pop %v491
      %v493 = vmul.f32 1.0, %v492
      %v494 = vlaneseq
      %v495 = vand.u32 %v494, 127
      %vm496 = vcmp.eq.s32.totalorder %v495, 0
      %v497 = vsel %vm496, %v493, %v485
      %498 = vst [vmem:[%s168] sm:$0xff] %v497
      %p499 = scmp.lt.s32.totalorder %s14, 1
      %s500 = scalar_select %p499, %s14, 1
      %s501 = smul.addr %s500, 8
      %s502 = scalar_lea.vmem %s3, %s501
      // Predicated region
      $region33: #{reg_class_mix_forward.1} parent=31 // pred_check
        %p503 = pneg %p100
      $region34: #{reg_class_mix_forward.1} parent=31 // pred_check_branch
        %505 = sbr.rel (%p503) target = $region36
      $region35: #{reg_class_mix_forward.1} parent=31 // pred_region
        _
      $region36: #{reg_class_mix_forward.1} parent=31 // pred_fallthru
        _
    $region32: #{reg_class_mix_forward.1} parent=5 // pred_fallthru
      _
    %p506 = scmp.le.s32.totalorder 2, %s9
    // Predicated region
    $region37: #{reg_class_mix_forward.1} parent=5 // pred_check
      %p507 = pneg %p506
    $region38: #{reg_class_mix_forward.1} parent=5 // pred_check_branch
      %509 = sbr.rel (%p507) target = $region40
    $region39: #{reg_class_mix_forward.1} parent=5 // pred_region
      %s510 = ssub.s32 %s9, 2
      // Predicated region
      $region41: #{reg_class_mix_forward.1} parent=39 // pred_check
        %p511 = pneg %p106
      $region42: #{reg_class_mix_forward.1} parent=39 // pred_check_branch
        %513 = sbr.rel (%p511) target = $region44
      $region43: #{reg_class_mix_forward.1} parent=39 // pred_region
        %p514 = scmp.lt.s32.totalorder %s15, 1
        %s515 = scalar_select %p514, %s15, 1
        %s516 = smul.addr %s515, 8
        %s517 = scalar_lea.vmem %s3, %s516
      $region44: #{reg_class_mix_forward.1} parent=39 // pred_fallthru
        _
    $region40: #{reg_class_mix_forward.1} parent=5 // pred_fallthru
      _
  $region6: #{reg_class_mix_forward.1} parent=0 // loop_footer
    %s13 = sadd.s32 1, %s9
  $region7: #{reg_class_mix_forward.1} parent=0 // loop_footer_branch
    %8 = sbr.rel target = $region3
  $region8: #{reg_class_mix_forward.1} parent=0 // loop_exit
    _

</llo_original>
